<compile_context>
chip_gen: v7x
topology: tpu7x:2x2x1
jax: 0.10.0
libtpu: 0.0.40
codegen_flags: <defaults>
</compile_context>

<pallas_src>
import functools
import math

import jax
import jax.numpy as jnp
from jax.experimental import pallas as pl
from jax.experimental.pallas import tpu as pltpu

IN_F, H1, H2, OUT_F = 6, 18, 18, 16
PACK = 8        # edges packed per row: 8 * 16 output feats = 128 lanes (one vreg row)
MIN_GRID = 4    # target >= 4 grid steps when N allows (feeds both v7x TensorCores)


def _round_up(v, m):
    return ((v + m - 1) // m) * m


def _edge_mlp_kernel(x_ref, w1_ref, b1_ref, w2_ref, b2_ref, w3_ref, b3_ref,
                     o_ref):
    """Fused MLP on a (tile_rows, PACK*IN_F) tile of packed edges.

    Weights are block-diagonal (kron(I_PACK, W)) in bf16, so one lane-dense
    bf16 matmul applies the per-edge Linear to all PACK edges in a row.
    Accumulation is f32; bias-add / ReLU run in f32 on the VPU; activations
    are cast back to bf16 only where they feed the next MXU op.
    """
    h = jnp.dot(x_ref[...], w1_ref[...], preferred_element_type=jnp.float32)
    h = jnp.maximum(h + b1_ref[...], 0.0).astype(jnp.bfloat16)

    h = jnp.dot(h, w2_ref[...], preferred_element_type=jnp.float32)
    h = jnp.maximum(h + b2_ref[...], 0.0).astype(jnp.bfloat16)

    h = jnp.dot(h, w3_ref[...], preferred_element_type=jnp.float32)
    h = jnp.maximum(h + b3_ref[...], 0.0)

    o_ref[...] = h.astype(o_ref.dtype)


def pack_params(params, pack=PACK):
    """Expand per-edge weights to block-diagonal packed form (done once).

    Weights -> bf16 (MXU operands; halves resident VMEM / HBM bytes).
    Biases  -> f32  (added in the f32 epilogue).
    """
    eye = jnp.eye(pack, dtype=jnp.float32)
    packed = {}
    for i in (1, 2, 3):
        w = params[f"w{i}"].astype(jnp.float32)               # [in, out]
        b = params[f"b{i}"].reshape(1, -1)                    # [1, out]
        packed[f"w{i}"] = jnp.kron(eye, w).astype(jnp.bfloat16)      # [pack*in, pack*out]
        packed[f"b{i}"] = jnp.tile(b, (1, pack)).astype(jnp.float32)  # [1, pack*out]
    return packed


@functools.partial(jax.jit, static_argnames=("block_rows",))
def edge_encoder(x, packed_params, *, block_rows=4096):
    """x: [N, 6] float -> [N, 16] bfloat16.  packed_params from pack_params().

    For zero wrapper-side HBM overhead, supply N as a multiple of PACK (=8)
    and x already in bfloat16.
    """
    n = x.shape[0]
    x = x.astype(jnp.bfloat16)                     # no-op if caller passed bf16
    n_pad = _round_up(n, PACK)
    if n_pad != n:
        # TODO(synk): pad edge counts to a multiple of PACK upstream to avoid
        # this extra HBM copy (and the trailing slice) on a mem-bound kernel.
        x = jnp.pad(x, ((0, n_pad - n), (0, 0)))
    n8 = n_pad // PACK
    # Row-major-compatible reshape: 8 consecutive edges per packed row.
    x8 = x.reshape(n8, PACK * IN_F)                # [N/8, 48] bf16

    # Tile size: multiple of 8 (or the full extent), capped so the "parallel"
    # grid axis has >= MIN_GRID steps when N is large enough (v7x megacore).
    block_rows = max(8, (block_rows // 8) * 8)     # (8,128) sublane rule guard
    if n8 <= block_rows:
        if n8 >= MIN_GRID * 8:
            t8 = _round_up(pl.cdiv(n8, MIN_GRID), 8)
        else:
            t8 = n8                                # single full-extent tile
    else:
        t8 = block_rows
    grid = (pl.cdiv(n8, t8),)

    w1, b1 = packed_params["w1"], packed_params["b1"]
    w2, b2 = packed_params["w2"], packed_params["b2"]
    w3, b3 = packed_params["w3"], packed_params["b3"]

    row_map = lambda i: (i, 0)
    const_map = lambda i: (0, 0)
    full = lambda a: pl.BlockSpec(a.shape, const_map)   # VMEM-resident params

    flops = 2 * n8 * (w1.shape[0] * w1.shape[1]
                      + w2.shape[0] * w2.shape[1]
                      + w3.shape[0] * w3.shape[1])
    bytes_accessed = (x8.size + n8 * PACK * OUT_F) * 2 + sum(
        a.size * a.dtype.itemsize for a in (w1, b1, w2, b2, w3, b3))

    out8 = pl.pallas_call(
        _edge_mlp_kernel,
        out_shape=jax.ShapeDtypeStruct((n8, PACK * OUT_F), jnp.bfloat16),
        grid=grid,
        in_specs=[
            pl.BlockSpec((t8, PACK * IN_F), row_map),   # x tile  [t8, 48]
            full(w1), full(b1),                         # [48, 144], [1, 144]
            full(w2), full(b2),                         # [144, 144], [1, 144]
            full(w3), full(b3),                         # [144, 128], [1, 128]
        ],
        out_specs=pl.BlockSpec((t8, PACK * OUT_F), row_map),  # [t8, 128]
        compiler_params=pltpu.CompilerParams(
            dimension_semantics=("parallel",),
            vmem_limit_bytes=32 * 1024 * 1024),
        cost_estimate=pl.CostEstimate(flops=flops, transcendentals=0,
                                      bytes_accessed=bytes_accessed),
    )(x8, w1, b1, w2, b2, w3, b3)

    out = out8.reshape(n_pad, OUT_F)               # free reshape (row-major)
    if n_pad != n:
        out = out[:n]
    return out


def init_params(key):
    """Mimics PyTorch nn.Linear default init U(-1/sqrt(fan_in), 1/sqrt(fan_in))."""
    dims = [(IN_F, H1), (H1, H2), (H2, OUT_F)]
    params = {}
    keys = jax.random.split(key, 2 * len(dims))
    for i, (fan_in, fan_out) in enumerate(dims):
        bound = 1.0 / math.sqrt(fan_in)
        params[f"w{i + 1}"] = jax.random.uniform(
            keys[2 * i], (fan_in, fan_out), minval=-bound, maxval=bound,
            dtype=jnp.float32)
        params[f"b{i + 1}"] = jax.random.uniform(
            keys[2 * i + 1], (1, fan_out), minval=-bound, maxval=bound,
            dtype=jnp.float32)
    return params


def edge_encoder_ref(x, params):
    """Pure-JAX f32 reference (full-precision matmuls) for correctness check."""
    hp = jax.lax.Precision.HIGHEST
    h = jnp.maximum(jnp.dot(x, params["w1"], precision=hp) + params["b1"], 0.0)
    h = jnp.maximum(jnp.dot(h, params["w2"], precision=hp) + params["b2"], 0.0)
    h = jnp.maximum(jnp.dot(h, params["w3"], precision=hp) + params["b3"], 0.0)
    return h


if __name__ == "__main__":
    key = jax.random.PRNGKey(0)
    pkey, xkey = jax.random.split(key)

    params = init_params(pkey)
    packed = pack_params(params)

    # (N, block_rows):
    #   (256, 4096): multi-tile via the MIN_GRID megacore split (grid = 4).
    #   (1000, 16):  multi-tile grid with a ragged final block.
    #   (100, 4096): non-multiple-of-PACK N exercising the pad/slice fallback.
    for n, block_rows in ((256, 4096), (1000, 16), (100, 4096)):
        x = jax.random.normal(jax.random.fold_in(xkey, n), (n, IN_F),
                              dtype=jnp.float32)
        out = jax.block_until_ready(
            edge_encoder(x.astype(jnp.bfloat16), packed, block_rows=block_rows))
        ref = edge_encoder_ref(x, params)
        assert out.shape == (n, OUT_F), out.shape
        assert out.dtype == jnp.bfloat16, out.dtype
        out_f32 = out.astype(jnp.float32)
        max_err = float(jnp.max(jnp.abs(out_f32 - ref)))
        assert jnp.allclose(out_f32, ref, atol=5e-2, rtol=5e-2), \
            f"mismatch vs reference at N={n}: max abs err {max_err}"

    print("KERNEL_OK")
</pallas_src>

<mosaic_0001>
module attributes {stable_mosaic.version = 11 : i64} {
  func.func @_edge_mlp_kernel(%arg0: i32, %arg1: memref<8x48xbf16, #tpu.memory_space<vmem>>, %arg2: memref<48x144xbf16, #tpu.memory_space<vmem>>, %arg3: memref<1x144xf32, #tpu.memory_space<vmem>>, %arg4: memref<144x144xbf16, #tpu.memory_space<vmem>>, %arg5: memref<1x144xf32, #tpu.memory_space<vmem>>, %arg6: memref<144x128xbf16, #tpu.memory_space<vmem>>, %arg7: memref<1x128xf32, #tpu.memory_space<vmem>>, %arg8: memref<8x128xbf16, #tpu.memory_space<vmem>>) attributes {dimension_semantics = [#tpu.dimension_semantics<parallel>], iteration_bounds = array<i64: 4>, scalar_prefetch = 0 : i64, scratch_operands = 0 : i64, tpu.core_type = #tpu.core_type<tc>, window_params = [{transform_indices = @transform_0, window_bounds = array<i64: 8, 48>}, {pipeline_mode = #tpu.pipeline_mode<synchronous>, transform_indices = @transform_1, window_bounds = array<i64: 48, 144>}, {pipeline_mode = #tpu.pipeline_mode<synchronous>, transform_indices = @transform_2, window_bounds = array<i64: 1, 144>}, {pipeline_mode = #tpu.pipeline_mode<synchronous>, transform_indices = @transform_3, window_bounds = array<i64: 144, 144>}, {pipeline_mode = #tpu.pipeline_mode<synchronous>, transform_indices = @transform_4, window_bounds = array<i64: 1, 144>}, {pipeline_mode = #tpu.pipeline_mode<synchronous>, transform_indices = @transform_5, window_bounds = array<i64: 144, 128>}, {pipeline_mode = #tpu.pipeline_mode<synchronous>, transform_indices = @transform_6, window_bounds = array<i64: 1, 128>}, {transform_indices = @transform_7, window_bounds = array<i64: 8, 128>}]} {
    %c0 = arith.constant 0 : index
    %c0_0 = arith.constant 0 : index
    %0 = vector.load %arg1[%c0, %c0_0] : memref<8x48xbf16, #tpu.memory_space<vmem>>, vector<8x48xbf16>
    %c0_1 = arith.constant 0 : index
    %c0_2 = arith.constant 0 : index
    %1 = vector.load %arg2[%c0_1, %c0_2] : memref<48x144xbf16, #tpu.memory_space<vmem>>, vector<48x144xbf16>
    %cst = arith.constant dense<0.000000e+00> : vector<8x144xf32>
    %2 = tpu.matmul %0, %1, %cst {dimension_numbers = #tpu.dot_dimension_numbers<[1], [0], [0], [1], [0, 0, 1, 1], [], []>} : vector<8x48xbf16>, vector<48x144xbf16>, vector<8x144xf32> -> vector<8x144xf32>
    %c0_3 = arith.constant 0 : index
    %c0_4 = arith.constant 0 : index
    %3 = vector.load %arg3[%c0_3, %c0_4] : memref<1x144xf32, #tpu.memory_space<vmem>>, vector<1x144xf32>
    %4 = vector.broadcast %3 : vector<1x144xf32> to vector<8x144xf32>
    %5 = arith.addf %2, %4 : vector<8x144xf32>
    %cst_5 = arith.constant 0.000000e+00 : f32
    %6 = vector.broadcast %cst_5 : f32 to vector<8x144xf32>
    %7 = arith.maximumf %5, %6 : vector<8x144xf32>
    %8 = arith.truncf %7 : vector<8x144xf32> to vector<8x144xbf16>
    %c0_6 = arith.constant 0 : index
    %c0_7 = arith.constant 0 : index
    %9 = vector.load %arg4[%c0_6, %c0_7] : memref<144x144xbf16, #tpu.memory_space<vmem>>, vector<144x144xbf16>
    %cst_8 = arith.constant dense<0.000000e+00> : vector<8x144xf32>
    %10 = tpu.matmul %8, %9, %cst_8 {dimension_numbers = #tpu.dot_dimension_numbers<[1], [0], [0], [1], [0, 0, 1, 1], [], []>} : vector<8x144xbf16>, vector<144x144xbf16>, vector<8x144xf32> -> vector<8x144xf32>
    %c0_9 = arith.constant 0 : index
    %c0_10 = arith.constant 0 : index
    %11 = vector.load %arg5[%c0_9, %c0_10] : memref<1x144xf32, #tpu.memory_space<vmem>>, vector<1x144xf32>
    %12 = vector.broadcast %11 : vector<1x144xf32> to vector<8x144xf32>
    %13 = arith.addf %10, %12 : vector<8x144xf32>
    %cst_11 = arith.constant 0.000000e+00 : f32
    %14 = vector.broadcast %cst_11 : f32 to vector<8x144xf32>
    %15 = arith.maximumf %13, %14 : vector<8x144xf32>
    %16 = arith.truncf %15 : vector<8x144xf32> to vector<8x144xbf16>
    %c0_12 = arith.constant 0 : index
    %c0_13 = arith.constant 0 : index
    %17 = vector.load %arg6[%c0_12, %c0_13] : memref<144x128xbf16, #tpu.memory_space<vmem>>, vector<144x128xbf16>
    %cst_14 = arith.constant dense<0.000000e+00> : vector<8x128xf32>
    %18 = tpu.matmul %16, %17, %cst_14 {dimension_numbers = #tpu.dot_dimension_numbers<[1], [0], [0], [1], [0, 0, 1, 1], [], []>} : vector<8x144xbf16>, vector<144x128xbf16>, vector<8x128xf32> -> vector<8x128xf32>
    %c0_15 = arith.constant 0 : index
    %c0_16 = arith.constant 0 : index
    %19 = vector.load %arg7[%c0_15, %c0_16] : memref<1x128xf32, #tpu.memory_space<vmem>>, vector<1x128xf32>
    %20 = vector.broadcast %19 : vector<1x128xf32> to vector<8x128xf32>
    %21 = arith.addf %18, %20 : vector<8x128xf32>
    %cst_17 = arith.constant 0.000000e+00 : f32
    %22 = vector.broadcast %cst_17 : f32 to vector<8x128xf32>
    %23 = arith.maximumf %21, %22 : vector<8x128xf32>
    %24 = arith.truncf %23 : vector<8x128xf32> to vector<8x128xbf16>
    %c0_18 = arith.constant 0 : index
    %c0_19 = arith.constant 0 : index
    %25 = vector.load %arg8[%c0_18, %c0_19] : memref<8x128xbf16, #tpu.memory_space<vmem>>, vector<8x128xbf16>
    tpu.vector_store %arg8[%c0_18, %c0_19], %24 {strides = array<i32>} : memref<8x128xbf16, #tpu.memory_space<vmem>>, vector<8x128xbf16>,
    return
  }
  func.func @transform_0(%arg0: i32) -> (i32, i32) {
    %c0_i32 = arith.constant 0 : i32
    %c0_i32_0 = arith.constant 0 : i32
    return %arg0, %c0_i32 : i32, i32
  }
  func.func @transform_1(%arg0: i32) -> (i32, i32) {
    %c0_i32 = arith.constant 0 : i32
    %c0_i32_0 = arith.constant 0 : i32
    %c0_i32_1 = arith.constant 0 : i32
    return %c0_i32, %c0_i32_0 : i32, i32
  }
  func.func @transform_2(%arg0: i32) -> (i32, i32) {
    %c0_i32 = arith.constant 0 : i32
    %c0_i32_0 = arith.constant 0 : i32
    %c0_i32_1 = arith.constant 0 : i32
    return %c0_i32, %c0_i32_0 : i32, i32
  }
  func.func @transform_3(%arg0: i32) -> (i32, i32) {
    %c0_i32 = arith.constant 0 : i32
    %c0_i32_0 = arith.constant 0 : i32
    %c0_i32_1 = arith.constant 0 : i32
    return %c0_i32, %c0_i32_0 : i32, i32
  }
  func.func @transform_4(%arg0: i32) -> (i32, i32) {
    %c0_i32 = arith.constant 0 : i32
    %c0_i32_0 = arith.constant 0 : i32
    %c0_i32_1 = arith.constant 0 : i32
    return %c0_i32, %c0_i32_0 : i32, i32
  }
  func.func @transform_5(%arg0: i32) -> (i32, i32) {
    %c0_i32 = arith.constant 0 : i32
    %c0_i32_0 = arith.constant 0 : i32
    %c0_i32_1 = arith.constant 0 : i32
    return %c0_i32, %c0_i32_0 : i32, i32
  }
  func.func @transform_6(%arg0: i32) -> (i32, i32) {
    %c0_i32 = arith.constant 0 : i32
    %c0_i32_0 = arith.constant 0 : i32
    %c0_i32_1 = arith.constant 0 : i32
    return %c0_i32, %c0_i32_0 : i32, i32
  }
  func.func @transform_7(%arg0: i32) -> (i32, i32) {
    %c0_i32 = arith.constant 0 : i32
    %c0_i32_0 = arith.constant 0 : i32
    return %arg0, %c0_i32 : i32, i32
  }
}

</mosaic_0001>

<llo_original>
// kernel: edge_encoder.1
$region0: #{edge_encoder.1}
  #allocation0 [shape = 'u32[]', space=smem, size = 0x4, offset = 0x4, fixed_abs, tag = 'smem constant byte address 0x4 - core index']
  #allocation1 [shape = 'u32[144,128]{1,0:T(1,128)}', space=vmem, size = 0x12000, scoped, tag = 'internal scratch']
  %s0 = inlined_call_operand.vmem [shape: bf16[32,48], index: 0, kind: input, shape index: {}]
  %s1 = inlined_call_operand.vmem [shape: bf16[48,144], index: 1, kind: input, shape index: {}]
  %s2 = inlined_call_operand.vmem [shape: f32[1,144], index: 2, kind: input, shape index: {}]
  %s3 = inlined_call_operand.vmem [shape: bf16[144,144], index: 3, kind: input, shape index: {}]
  %s4 = inlined_call_operand.vmem [shape: f32[1,144], index: 4, kind: input, shape index: {}]
  %s5 = inlined_call_operand.vmem [shape: bf16[144,128], index: 5, kind: input, shape index: {}]
  %s6 = inlined_call_operand.vmem [shape: f32[1,128], index: 6, kind: input, shape index: {}]
  %s7 = inlined_call_operand.vmem [shape: bf16[32,128], index: 7, kind: output, shape index: {}]
  %s8 = sld [smem:[#allocation0]]
  $region61: #{edge_encoder.1} parent=0
    _
  %s10 = ssub.s32 1, %s8
  %s11 = scalar_select 0, %s10, %s8
  loop: start=0, step=1, limit=6
  $region2: #{edge_encoder.1} parent=0 // loop_pre_header
    _
  $region3: #{edge_encoder.1} parent=0 // loop_header
    %s13 = sphi 0, %s17
    %p14 = scmp.ge.s32.totalorder %s13, 6
    %s23 = sphi 0, %s25
    %s26 = sphi 0, %s23
    %s27 = sphi 0, %s26
    %s43 = sphi 0, %s27
    %s47 = sphi 0, %s47
    %s49 = sphi 0, %s47
    %s50 = sphi 0, %s49
    %s64 = sphi 0, %s50
    %s68 = sphi 0, %s68
    %s70 = sphi 0, %s68
    %s71 = sphi 0, %s70
    %s85 = sphi 0, %s71
    %s89 = sphi 0, %s89
    %s91 = sphi 0, %s89
    %s92 = sphi 0, %s91
    %s106 = sphi 0, %s92
    %s110 = sphi 0, %s110
    %s112 = sphi 0, %s110
    %s113 = sphi 0, %s112
    %s127 = sphi 0, %s113
    %s131 = sphi 0, %s131
    %s133 = sphi 0, %s131
    %s134 = sphi 0, %s133
    %s148 = sphi 0, %s134
    %s152 = sphi 0, %s152
    %s154 = sphi 0, %s152
    %s155 = sphi 0, %s154
    %s169 = sphi 0, %s155
    %s175 = sphi 0, %s177
    %s178 = sphi 0, %s175
    %s179 = sphi 0, %s178
    %s195 = sphi 0, %s179
  $region4: #{edge_encoder.1} parent=0 // loop_header_branch
    %16 = sbr.rel (%p14) target = $region8
  $region5: #{edge_encoder.1} parent=0 // loop_body
    %s18 = ssub.s32 %s13, 1
    %s19 = ssub.s32 %s13, 2
    %s20 = sadd.s32 %s13, 1
    %s21 = ssub.s32 %s13, %s20
    %p22 = scmp.eq.s32.totalorder %s21, 0
    %s24 = sadd.s32 %s23, 1
    %s25 = scalar_select %p22, %s23, %s24
    %p28 = pneg %p22
    %p29 = scmp.eq.s32.totalorder %s13, 3
    %p30 = por %p28, %p29
    %p31 = scmp.ne.s32.totalorder %s23, %s26
    %p32 = scmp.eq.s32.totalorder %s13, 0
    %p33 = por %p31, %p32
    %p34 = scmp.ne.s32.totalorder %s23, %s26
    %p35 = scmp.eq.s32.totalorder %s18, 3
    %p36 = por %p34, %p35
    %p37 = scmp.ne.s32.totalorder %s26, %s27
    %p38 = scmp.eq.s32.totalorder %s18, 0
    %p39 = por %p37, %p38
    %p40 = scmp.ne.s32.totalorder %s26, %s27
    %p41 = scmp.eq.s32.totalorder %s19, 3
    %p42 = por %p40, %p41
    %p44 = scmp.ne.s32.totalorder %s27, %s43
    %p45 = scmp.eq.s32.totalorder %s19, 0
    %p46 = por %p44, %p45
    %s48 = sadd.s32 %s47, 1
    %p51 = scmp.eq.s32.totalorder %s13, 3
    %p52 = scmp.ne.s32.totalorder %s47, %s49
    %p53 = scmp.eq.s32.totalorder %s13, 0
    %p54 = por %p52, %p53
    %p55 = scmp.ne.s32.totalorder %s47, %s49
    %p56 = scmp.eq.s32.totalorder %s18, 3
    %p57 = por %p55, %p56
    %p58 = scmp.ne.s32.totalorder %s49, %s50
    %p59 = scmp.eq.s32.totalorder %s18, 0
    %p60 = por %p58, %p59
    %p61 = scmp.ne.s32.totalorder %s49, %s50
    %p62 = scmp.eq.s32.totalorder %s19, 3
    %p63 = por %p61, %p62
    %p65 = scmp.ne.s32.totalorder %s50, %s64
    %p66 = scmp.eq.s32.totalorder %s19, 0
    %p67 = por %p65, %p66
    %s69 = sadd.s32 %s68, 1
    %p72 = scmp.eq.s32.totalorder %s13, 3
    %p73 = scmp.ne.s32.totalorder %s68, %s70
    %p74 = scmp.eq.s32.totalorder %s13, 0
    %p75 = por %p73, %p74
    %p76 = scmp.ne.s32.totalorder %s68, %s70
    %p77 = scmp.eq.s32.totalorder %s18, 3
    %p78 = por %p76, %p77
    %p79 = scmp.ne.s32.totalorder %s70, %s71
    %p80 = scmp.eq.s32.totalorder %s18, 0
    %p81 = por %p79, %p80
    %p82 = scmp.ne.s32.totalorder %s70, %s71
    %p83 = scmp.eq.s32.totalorder %s19, 3
    %p84 = por %p82, %p83
    %p86 = scmp.ne.s32.totalorder %s71, %s85
    %p87 = scmp.eq.s32.totalorder %s19, 0
    %p88 = por %p86, %p87
    %s90 = sadd.s32 %s89, 1
    %p93 = scmp.eq.s32.totalorder %s13, 3
    %p94 = scmp.ne.s32.totalorder %s89, %s91
    %p95 = scmp.eq.s32.totalorder %s13, 0
    %p96 = por %p94, %p95
    %p97 = scmp.ne.s32.totalorder %s89, %s91
    %p98 = scmp.eq.s32.totalorder %s18, 3
    %p99 = por %p97, %p98
    %p100 = scmp.ne.s32.totalorder %s91, %s92
    %p101 = scmp.eq.s32.totalorder %s18, 0
    %p102 = por %p100, %p101
    %p103 = scmp.ne.s32.totalorder %s91, %s92
    %p104 = scmp.eq.s32.totalorder %s19, 3
    %p105 = por %p103, %p104
    %p107 = scmp.ne.s32.totalorder %s92, %s106
    %p108 = scmp.eq.s32.totalorder %s19, 0
    %p109 = por %p107, %p108
    %s111 = sadd.s32 %s110, 1
    %p114 = scmp.eq.s32.totalorder %s13, 3
    %p115 = scmp.ne.s32.totalorder %s110, %s112
    %p116 = scmp.eq.s32.totalorder %s13, 0
    %p117 = por %p115, %p116
    %p118 = scmp.ne.s32.totalorder %s110, %s112
    %p119 = scmp.eq.s32.totalorder %s18, 3
    %p120 = por %p118, %p119
    %p121 = scmp.ne.s32.totalorder %s112, %s113
    %p122 = scmp.eq.s32.totalorder %s18, 0
    %p123 = por %p121, %p122
    %p124 = scmp.ne.s32.totalorder %s112, %s113
    %p125 = scmp.eq.s32.totalorder %s19, 3
    %p126 = por %p124, %p125
    %p128 = scmp.ne.s32.totalorder %s113, %s127
    %p129 = scmp.eq.s32.totalorder %s19, 0
    %p130 = por %p128, %p129
    %s132 = sadd.s32 %s131, 1
    %p135 = scmp.eq.s32.totalorder %s13, 3
    %p136 = scmp.ne.s32.totalorder %s131, %s133
    %p137 = scmp.eq.s32.totalorder %s13, 0
    %p138 = por %p136, %p137
    %p139 = scmp.ne.s32.totalorder %s131, %s133
    %p140 = scmp.eq.s32.totalorder %s18, 3
    %p141 = por %p139, %p140
    %p142 = scmp.ne.s32.totalorder %s133, %s134
    %p143 = scmp.eq.s32.totalorder %s18, 0
    %p144 = por %p142, %p143
    %p145 = scmp.ne.s32.totalorder %s133, %s134
    %p146 = scmp.eq.s32.totalorder %s19, 3
    %p147 = por %p145, %p146
    %p149 = scmp.ne.s32.totalorder %s134, %s148
    %p150 = scmp.eq.s32.totalorder %s19, 0
    %p151 = por %p149, %p150
    %s153 = sadd.s32 %s152, 1
    %p156 = scmp.eq.s32.totalorder %s13, 3
    %p157 = scmp.ne.s32.totalorder %s152, %s154
    %p158 = scmp.eq.s32.totalorder %s13, 0
    %p159 = por %p157, %p158
    %p160 = scmp.ne.s32.totalorder %s152, %s154
    %p161 = scmp.eq.s32.totalorder %s18, 3
    %p162 = por %p160, %p161
    %p163 = scmp.ne.s32.totalorder %s154, %s155
    %p164 = scmp.eq.s32.totalorder %s18, 0
    %p165 = por %p163, %p164
    %p166 = scmp.ne.s32.totalorder %s154, %s155
    %p167 = scmp.eq.s32.totalorder %s19, 3
    %p168 = por %p166, %p167
    %p170 = scmp.ne.s32.totalorder %s155, %s169
    %p171 = scmp.eq.s32.totalorder %s19, 0
    %p172 = por %p170, %p171
    %s173 = ssub.s32 %s13, %s20
    %p174 = scmp.eq.s32.totalorder %s173, 0
    %s176 = sadd.s32 %s175, 1
    %s177 = scalar_select %p174, %s175, %s176
    %p180 = pneg %p174
    %p181 = scmp.eq.s32.totalorder %s13, 3
    %p182 = por %p180, %p181
    %p183 = scmp.ne.s32.totalorder %s175, %s178
    %p184 = scmp.eq.s32.totalorder %s13, 0
    %p185 = por %p183, %p184
    %p186 = scmp.ne.s32.totalorder %s175, %s178
    %p187 = scmp.eq.s32.totalorder %s18, 3
    %p188 = por %p186, %p187
    %p189 = scmp.ne.s32.totalorder %s178, %s179
    %p190 = scmp.eq.s32.totalorder %s18, 0
    %p191 = por %p189, %p190
    %p192 = scmp.ne.s32.totalorder %s178, %s179
    %p193 = scmp.eq.s32.totalorder %s19, 3
    %p194 = por %p192, %p193
    %p196 = scmp.ne.s32.totalorder %s179, %s195
    %p197 = scmp.eq.s32.totalorder %s19, 0
    %p198 = por %p196, %p197
    %p199 = scmp.le.s32.totalorder 1, %s13
    %p200 = scmp.lt.s32.totalorder %s13, 5
    %p201 = pnand %p199, %p200
    %p202 = pneg %p201
    // Predicated region
    $region9: #{edge_encoder.1} parent=5 // pred_check
      _
    $region10: #{edge_encoder.1} parent=5 // pred_check_branch
      %204 = sbr.rel (%p201) target = $region12
    $region11: #{edge_encoder.1} parent=5 // pred_region
      %s205 = ssub.s32 %s13, 1
      // Predicated region
      $region13: #{edge_encoder.1} parent=11 // pred_check
        %p206 = pneg %p60
      $region14: #{edge_encoder.1} parent=11 // pred_check_branch
        %208 = sbr.rel (%p206) target = $region16
      $region15: #{edge_encoder.1} parent=11 // pred_region
        _
      $region16: #{edge_encoder.1} parent=11 // pred_fallthru
        _
      // Predicated region
      $region17: #{edge_encoder.1} parent=11 // pred_check
        %p209 = pneg %p81
      $region18: #{edge_encoder.1} parent=11 // pred_check_branch
        %211 = sbr.rel (%p209) target = $region20
      $region19: #{edge_encoder.1} parent=11 // pred_region
        _
      $region20: #{edge_encoder.1} parent=11 // pred_fallthru
        _
      // Predicated region
      $region21: #{edge_encoder.1} parent=11 // pred_check
        %p212 = pneg %p102
      $region22: #{edge_encoder.1} parent=11 // pred_check_branch
        %214 = sbr.rel (%p212) target = $region24
      $region23: #{edge_encoder.1} parent=11 // pred_region
        _
      $region24: #{edge_encoder.1} parent=11 // pred_fallthru
        _
      // Predicated region
      $region25: #{edge_encoder.1} parent=11 // pred_check
        %p215 = pneg %p123
      $region26: #{edge_encoder.1} parent=11 // pred_check_branch
        %217 = sbr.rel (%p215) target = $region28
      $region27: #{edge_encoder.1} parent=11 // pred_region
        _
      $region28: #{edge_encoder.1} parent=11 // pred_fallthru
        _
      // Predicated region
      $region29: #{edge_encoder.1} parent=11 // pred_check
        %p218 = pneg %p144
      $region30: #{edge_encoder.1} parent=11 // pred_check_branch
        %220 = sbr.rel (%p218) target = $region32
      $region31: #{edge_encoder.1} parent=11 // pred_region
        _
      $region32: #{edge_encoder.1} parent=11 // pred_fallthru
        _
      // Predicated region
      $region33: #{edge_encoder.1} parent=11 // pred_check
        %p221 = pneg %p165
      $region34: #{edge_encoder.1} parent=11 // pred_check_branch
        %223 = sbr.rel (%p221) target = $region36
      $region35: #{edge_encoder.1} parent=11 // pred_region
        _
      $region36: #{edge_encoder.1} parent=11 // pred_fallthru
        _
    $region12: #{edge_encoder.1} parent=5 // pred_fallthru
      _
    %p224 = scmp.lt.s32.totalorder %s13, 4
    // Predicated region
    $region37: #{edge_encoder.1} parent=5 // pred_check
      %p225 = pneg %p224
    $region38: #{edge_encoder.1} parent=5 // pred_check_branch
      %227 = sbr.rel (%p225) target = $region40
    $region39: #{edge_encoder.1} parent=5 // pred_region
      // Predicated region
      $region41: #{edge_encoder.1} parent=39 // pred_check
        %p228 = pneg %p33
      $region42: #{edge_encoder.1} parent=39 // pred_check_branch
        %230 = sbr.rel (%p228) target = $region44
      $region43: #{edge_encoder.1} parent=39 // pred_region
        %p231 = scmp.lt.s32.totalorder %s13, 3
        %s232 = scalar_select %p231, %s13, 3
        %s233 = smul.addr %s232, 4
        %s234 = scalar_lea.vmem %s0, %s233
      $region44: #{edge_encoder.1} parent=39 // pred_fallthru
        _
    $region40: #{edge_encoder.1} parent=5 // pred_fallthru
      _
    %p235 = scmp.le.s32.totalorder 1, %s13
    %p236 = scmp.lt.s32.totalorder %s13, 5
    %p237 = pnand %p235, %p236
    %p238 = pneg %p237
    // Predicated region
    $region45: #{edge_encoder.1} parent=5 // pred_check
      _
    $region46: #{edge_encoder.1} parent=5 // pred_check_branch
      %240 = sbr.rel (%p237) target = $region48
    $region47: #{edge_encoder.1} parent=5 // pred_region
      %s241 = ssub.s32 %s13, 1
      %p242 = scmp.lt.s32.totalorder %s18, 3
      %s243 = scalar_select %p242, %s18, 3
      %s244 = smul.addr %s243, 4
      %s245 = scalar_lea.vmem %s0, %s244
      %p246 = pneg %p39
      %p247 = pneg %p36
      %p248 = pneg %p60
      %p249 = pneg %p57
      %p250 = pneg %p81
      %p251 = pneg %p78
      %p252 = pneg %p102
      %p253 = pneg %p99
      %p254 = pneg %p123
      %p255 = pneg %p120
      %p256 = pneg %p144
      %p257 = pneg %p141
      %p258 = pneg %p165
      %p259 = pneg %p162
      %p260 = pneg %p191
      %p261 = pneg %p188
      %p262 = scmp.lt.s32.totalorder %s18, 3
      %s263 = scalar_select %p262, %s18, 3
      %s264 = smul.addr %s263, 4
      %s265 = scalar_lea.vmem %s7, %s264
      %p266 = scmp.lt.s32.totalorder %s18, 3
      %s267 = scalar_select %p266, %s18, 3
      %s268 = smul.addr %s267, 4
      %s269 = scalar_lea.vmem %s0, %s268
      %p270 = scmp.lt.s32.totalorder %s18, 3
      %s271 = scalar_select %p270, %s18, 3
      %s272 = smul.addr %s271, 4
      %s273 = scalar_lea.vmem %s7, %s272
      %v275 = vld [vmem:[%s269] sm:$0xf]
      %v276 = vld [vmem:[%s1] sm:$0xff]
      %v277 = vld [vmem:[%s1 + $0x8] sm:$0xff]
      %v278 = vld [vmem:[%s1 + $0x10] sm:$0xff]
      %v279 = vld [vmem:[%s1 + $0x18] sm:$0xff]
      %v280 = vld [vmem:[%s1 + $0x20] sm:$0xff]
      %v281 = vld [vmem:[%s1 + $0x28] sm:$0xff]
      %v282 = vld [vmem:[%s2] sm:$0x3]
      %v284 = vlaneseq
      %v285 = vshrl.u32 %v284, 7
      %v286 = vsub.s32 0, %v285
      %v287 = vrot.slane %v282, %v286
      %v288 = vlaneseq
      %v289 = vshrl.u32 %v288, 7
      %v290 = vsub.s32 1, %v289
      %v291 = vrot.slane %v282, %v290
      %v300 = vunpack.c.l.b16 %v276
      %v301 = vunpack.c.h.b16 %v276
      %v302 = vunpack.c.l.b16 %v277
      %v303 = vunpack.c.h.b16 %v277
      %v304 = vunpack.c.l.b16 %v278
      %v305 = vunpack.c.h.b16 %v278
      %v306 = vunpack.c.l.b16 %v279
      %v307 = vunpack.c.h.b16 %v279
      %v308 = vunpack.c.l.b16 %v280
      %v309 = vunpack.c.h.b16 %v280
      %v310 = vunpack.c.l.b16 %v281
      %v311 = vunpack.c.h.b16 %v281
      %v312 = vpack.c.b16 %v302, %v300
      %v313 = vpack.c.b16 %v303, %v301
      %v314 = vpack.c.b16 %v306, %v304
      %v315 = vpack.c.b16 %v307, %v305
      %v316 = vpack.c.b16 %v310, %v308
      %v317 = vpack.c.b16 %v311, %v309
      %vm324 = vcmask 392192
      %v326 = vsel %vm324, %v275, 0
      %328 = vmatprep.subr.bf16.mxu0 %v313
      %329 = vmatpush1.bf16.msra.mxu0 %v312
      %330 = vmatprep.subr.bf16.mxu0 %v315
      %331 = vmatpush1.bf16.msra.mxu0 %v314
      %332 = vmatprep.subr.bf16.mxu0 %v317
      %333 = vmatpush1.bf16.msra.mxu0 %v316
      %334 = vmatprep.subr.bf16.mxu0 0
      %335 = vmatpush1.bf16.msra.mxu0 0
      %336 = vmatprep.subr.bf16.mxu0 0
      %337 = vmatpush1.bf16.msra.mxu0 0
      %338 = vmatprep.subr.bf16.mxu0 0
      %339 = vmatpush1.bf16.msra.mxu0 0
      %340 = vmatprep.subr.bf16.mxu0 0
      %341 = vmatpush1.bf16.msra.mxu0 0
      %342 = vmatprep.subr.bf16.mxu0 0
      %343 = vmatpush1.bf16.msra.mxu0 0
      %344 = vmatprep.subr.bf16.mxu0 0
      %345 = vmatpush1.bf16.msra.mxu0 0
      %346 = vmatprep.subr.bf16.mxu0 0
      %347 = vmatpush1.bf16.msra.mxu0 0
      %348 = vmatprep.subr.bf16.mxu0 0
      %349 = vmatpush1.bf16.msra.mxu0 0
      %350 = vmatprep.subr.bf16.mxu0 0
      %351 = vmatpush1.bf16.msra.mxu0 0
      %352 = vmatprep.subr.bf16.mxu0 0
      %353 = vmatpush1.bf16.msra.mxu0 0
      %354 = vmatprep.subr.bf16.mxu0 0
      %355 = vmatpush1.bf16.msra.mxu0 0
      %356 = vmatprep.subr.bf16.mxu0 0
      %357 = vmatpush1.bf16.msra.mxu0 0
      %358 = vmatprep.subr.bf16.mxu0 0
      %359 = vmatpush1.bf16.msra.mxu0 0
      %360 = vmatprep.mubr.bf16.mxu0 0
      %361 = vmatmul.mubr.bf16.gmra.mrb[0].mxu0 %v326
      %v362 = vpop.f32.mrb[0].mxu0
      %v363 = vadd.f32 %v287, %v362
      %v364 = vpop.f32.mrb[0].mxu0
      %v365 = vadd.f32 %v291, %v364
      %v366 = vpop.f32.mrb[0].mxu0
      %v367 = vpop.f32.mrb[0].mxu0
      %368 = vdwg.mxu0
      %v369 = vmax.f32 %v363, 0.0
      %v370 = vmax.f32 %v365, 0.0
      %v371 = vpack.c.bf16 %v369, %v369
      %v372 = vpack.c.bf16 %v370, %v370
      %v373 = vld [vmem:[%s3] sm:$0xff]
      %v374 = vld [vmem:[%s3 + $0x8] sm:$0xff]
      %v375 = vld [vmem:[%s3 + $0x10] sm:$0xff]
      %v376 = vld [vmem:[%s3 + $0x18] sm:$0xff]
      %v377 = vld [vmem:[%s3 + $0x20] sm:$0xff]
      %v378 = vld [vmem:[%s3 + $0x28] sm:$0xff]
      %v379 = vld [vmem:[%s3 + $0x30] sm:$0xff]
      %v380 = vld [vmem:[%s3 + $0x38] sm:$0xff]
      %v381 = vld [vmem:[%s3 + $0x40] sm:$0xff]
      %v382 = vld [vmem:[%s3 + $0x48] sm:$0xff]
      %v383 = vld [vmem:[%s3 + $0x50] sm:$0xff]
      %v384 = vld [vmem:[%s3 + $0x58] sm:$0xff]
      %v385 = vld [vmem:[%s3 + $0x60] sm:$0xff]
      %v386 = vld [vmem:[%s3 + $0x68] sm:$0xff]
      %v387 = vld [vmem:[%s3 + $0x70] sm:$0xff]
      %v388 = vld [vmem:[%s3 + $0x78] sm:$0xff]
      %v389 = vld [vmem:[%s3 + $0x80] sm:$0xff]
      %v390 = vld [vmem:[%s3 + $0x88] sm:$0xff]
      %v391 = vld [vmem:[%s4] sm:$0x3]
      %v393 = vlaneseq
      %v394 = vshrl.u32 %v393, 7
      %v395 = vsub.s32 0, %v394
      %v396 = vrot.slane %v391, %v395
      %v397 = vlaneseq
      %v398 = vshrl.u32 %v397, 7
      %v399 = vsub.s32 1, %v398
      %v400 = vrot.slane %v391, %v399
      %v421 = vunpack.c.l.b16 %v373
      %v422 = vunpack.c.h.b16 %v373
      %v423 = vunpack.c.l.b16 %v374
      %v424 = vunpack.c.h.b16 %v374
      %v425 = vunpack.c.l.b16 %v375
      %v426 = vunpack.c.h.b16 %v375
      %v427 = vunpack.c.l.b16 %v376
      %v428 = vunpack.c.h.b16 %v376
      %v429 = vunpack.c.l.b16 %v377
      %v430 = vunpack.c.h.b16 %v377
      %v431 = vunpack.c.l.b16 %v378
      %v432 = vunpack.c.h.b16 %v378
      %v433 = vunpack.c.l.b16 %v379
      %v434 = vunpack.c.h.b16 %v379
      %v435 = vunpack.c.l.b16 %v380
      %v436 = vunpack.c.h.b16 %v380
      %v437 = vunpack.c.l.b16 %v381
      %v438 = vunpack.c.h.b16 %v381
      %v439 = vunpack.c.l.b16 %v382
      %v440 = vunpack.c.h.b16 %v382
      %v441 = vunpack.c.l.b16 %v383
      %v442 = vunpack.c.h.b16 %v383
      %v443 = vunpack.c.l.b16 %v384
      %v444 = vunpack.c.h.b16 %v384
      %v445 = vunpack.c.l.b16 %v385
      %v446 = vunpack.c.h.b16 %v385
      %v447 = vunpack.c.l.b16 %v386
      %v448 = vunpack.c.h.b16 %v386
      %v449 = vunpack.c.l.b16 %v387
      %v450 = vunpack.c.h.b16 %v387
      %v451 = vunpack.c.l.b16 %v388
      %v452 = vunpack.c.h.b16 %v388
      %v453 = vunpack.c.l.b16 %v389
      %v454 = vunpack.c.h.b16 %v389
      %v455 = vunpack.c.l.b16 %v390
      %v456 = vunpack.c.h.b16 %v390
      %v457 = vpack.c.b16 %v423, %v421
      %v458 = vpack.c.b16 %v424, %v422
      %v459 = vpack.c.b16 %v427, %v425
      %v460 = vpack.c.b16 %v428, %v426
      %v461 = vpack.c.b16 %v431, %v429
      %v462 = vpack.c.b16 %v432, %v430
      %v463 = vpack.c.b16 %v435, %v433
      %v464 = vpack.c.b16 %v436, %v434
      %v465 = vpack.c.b16 %v439, %v437
      %v466 = vpack.c.b16 %v440, %v438
      %v467 = vpack.c.b16 %v443, %v441
      %v468 = vpack.c.b16 %v444, %v442
      %v469 = vpack.c.b16 %v447, %v445
      %v470 = vpack.c.b16 %v448, %v446
      %v471 = vpack.c.b16 %v451, %v449
      %v472 = vpack.c.b16 %v452, %v450
      %v473 = vpack.c.b16 %v455, %v453
      %v474 = vpack.c.b16 %v456, %v454
      %vm493 = vcmask 130048
      %v495 = vsel %vm493, %v372, 0
      %497 = vmatprep.subr.bf16.mxu0 %v458
      %498 = vmatpush1.bf16.msra.mxu0 %v457
      %499 = vmatprep.subr.bf16.mxu0 %v460
      %500 = vmatpush1.bf16.msra.mxu0 %v459
      %501 = vmatprep.subr.bf16.mxu0 %v462
      %502 = vmatpush1.bf16.msra.mxu0 %v461
      %503 = vmatprep.subr.bf16.mxu0 %v464
      %504 = vmatpush1.bf16.msra.mxu0 %v463
      %505 = vmatprep.subr.bf16.mxu0 %v466
      %506 = vmatpush1.bf16.msra.mxu0 %v465
      %507 = vmatprep.subr.bf16.mxu0 %v468
      %508 = vmatpush1.bf16.msra.mxu0 %v467
      %509 = vmatprep.subr.bf16.mxu0 %v470
      %510 = vmatpush1.bf16.msra.mxu0 %v469
      %511 = vmatprep.subr.bf16.mxu0 %v472
      %512 = vmatpush1.bf16.msra.mxu0 %v471
      %513 = vmatprep.subr.bf16.mxu0 %v474
      %514 = vmatpush1.bf16.msra.mxu0 %v473
      %515 = vmatprep.subr.bf16.mxu0 0
      %516 = vmatpush1.bf16.msra.mxu0 0
      %517 = vmatprep.subr.bf16.mxu0 0
      %518 = vmatpush1.bf16.msra.mxu0 0
      %519 = vmatprep.subr.bf16.mxu0 0
      %520 = vmatpush1.bf16.msra.mxu0 0
      %521 = vmatprep.subr.bf16.mxu0 0
      %522 = vmatpush1.bf16.msra.mxu0 0
      %523 = vmatprep.subr.bf16.mxu0 0
      %524 = vmatpush1.bf16.msra.mxu0 0
      %525 = vmatprep.subr.bf16.mxu0 0
      %526 = vmatpush1.bf16.msra.mxu0 0
      %527 = vmatprep.subr.bf16.mxu0 0
      %528 = vmatpush1.bf16.msra.mxu0 0
      %529 = vmatprep.mubr.bf16.mxu0 %v495
      %530 = vmatmul.mubr.bf16.gmra.mrb[0].mxu0 %v371
      %v531 = vpop.f32.mrb[0].mxu0
      %v532 = vadd.f32 %v396, %v531
      %v533 = vpop.f32.mrb[0].mxu0
      %v534 = vadd.f32 %v400, %v533
      %v535 = vpop.f32.mrb[0].mxu0
      %v536 = vpop.f32.mrb[0].mxu0
      %537 = vdwg.mxu0
      %v538 = vmax.f32 %v532, 0.0
      %v539 = vmax.f32 %v534, 0.0
      %v540 = vpack.c.bf16 %v538, %v538
      %v541 = vpack.c.bf16 %v539, %v539
      %v542 = vld [vmem:[%s5] sm:$0xf]
      %v543 = vld [vmem:[%s5 + $0x4] sm:$0xf]
      %v544 = vld [vmem:[%s5 + $0x8] sm:$0xf]
      %v545 = vld [vmem:[%s5 + $0xc] sm:$0xf]
      %v546 = vld [vmem:[%s5 + $0x10] sm:$0xf]
      %v547 = vld [vmem:[%s5 + $0x14] sm:$0xf]
      %v548 = vld [vmem:[%s5 + $0x18] sm:$0xf]
      %v549 = vld [vmem:[%s5 + $0x1c] sm:$0xf]
      %v550 = vld [vmem:[%s5 + $0x20] sm:$0xf]
      %v551 = vld [vmem:[%s5 + $0x24] sm:$0xf]
      %v552 = vld [vmem:[%s5 + $0x28] sm:$0xf]
      %v553 = vld [vmem:[%s5 + $0x2c] sm:$0xf]
      %v554 = vld [vmem:[%s5 + $0x30] sm:$0xf]
      %v555 = vld [vmem:[%s5 + $0x34] sm:$0xf]
      %v556 = vld [vmem:[%s5 + $0x38] sm:$0xf]
      %v557 = vld [vmem:[%s5 + $0x3c] sm:$0xf]
      %v558 = vld [vmem:[%s5 + $0x40] sm:$0xf]
      %v559 = vld [vmem:[%s5 + $0x44] sm:$0xf]
      %v560 = vld [vmem:[%s6] sm:$0x1]
      %v562 = vlaneseq
      %v563 = vshrl.u32 %v562, 7
      %v564 = vsub.s32 0, %v563
      %v565 = vrot.slane %v560, %v564
      %v585 = vunpack.c.l.b16 %v542
      %v586 = vunpack.c.l.b16 %v543
      %v587 = vunpack.c.l.b16 %v544
      %v588 = vunpack.c.l.b16 %v545
      %v589 = vunpack.c.l.b16 %v546
      %v590 = vunpack.c.l.b16 %v547
      %v591 = vunpack.c.l.b16 %v548
      %v592 = vunpack.c.l.b16 %v549
      %v593 = vunpack.c.l.b16 %v550
      %v594 = vunpack.c.l.b16 %v551
      %v595 = vunpack.c.l.b16 %v552
      %v596 = vunpack.c.l.b16 %v553
      %v597 = vunpack.c.l.b16 %v554
      %v598 = vunpack.c.l.b16 %v555
      %v599 = vunpack.c.l.b16 %v556
      %v600 = vunpack.c.l.b16 %v557
      %v601 = vunpack.c.l.b16 %v558
      %v602 = vunpack.c.l.b16 %v559
      %v603 = vpack.c.b16 %v586, %v585
      %v604 = vpack.c.b16 %v588, %v587
      %v605 = vpack.c.b16 %v590, %v589
      %v606 = vpack.c.b16 %v592, %v591
      %v607 = vpack.c.b16 %v594, %v593
      %v608 = vpack.c.b16 %v596, %v595
      %v609 = vpack.c.b16 %v598, %v597
      %v610 = vpack.c.b16 %v600, %v599
      %v611 = vpack.c.b16 %v602, %v601
      %v622 = vsel %vm493, %v541, 0
      %624 = vmatprep.subr.bf16.mxu0 0
      %625 = vmatpush1.bf16.msra.mxu0 %v603
      %626 = vmatprep.subr.bf16.mxu0 0
      %627 = vmatpush1.bf16.msra.mxu0 %v604
      %628 = vmatprep.subr.bf16.mxu0 0
      %629 = vmatpush1.bf16.msra.mxu0 %v605
      %630 = vmatprep.subr.bf16.mxu0 0
      %631 = vmatpush1.bf16.msra.mxu0 %v606
      %632 = vmatprep.subr.bf16.mxu0 0
      %633 = vmatpush1.bf16.msra.mxu0 %v607
      %634 = vmatprep.subr.bf16.mxu0 0
      %635 = vmatpush1.bf16.msra.mxu0 %v608
      %636 = vmatprep.subr.bf16.mxu0 0
      %637 = vmatpush1.bf16.msra.mxu0 %v609
      %638 = vmatprep.subr.bf16.mxu0 0
      %639 = vmatpush1.bf16.msra.mxu0 %v610
      %640 = vmatprep.subr.bf16.mxu0 0
      %641 = vmatpush1.bf16.msra.mxu0 %v611
      %642 = vmatprep.subr.bf16.mxu0 0
      %643 = vmatpush1.bf16.msra.mxu0 0
      %644 = vmatprep.subr.bf16.mxu0 0
      %645 = vmatpush1.bf16.msra.mxu0 0
      %646 = vmatprep.subr.bf16.mxu0 0
      %647 = vmatpush1.bf16.msra.mxu0 0
      %648 = vmatprep.subr.bf16.mxu0 0
      %649 = vmatpush1.bf16.msra.mxu0 0
      %650 = vmatprep.subr.bf16.mxu0 0
      %651 = vmatpush1.bf16.msra.mxu0 0
      %652 = vmatprep.subr.bf16.mxu0 0
      %653 = vmatpush1.bf16.msra.mxu0 0
      %654 = vmatprep.subr.bf16.mxu0 0
      %655 = vmatpush1.bf16.msra.mxu0 0
      %656 = vmatprep.mubr.bf16.mxu0 %v622
      %657 = vmatmul.mubr.bf16.gmra.mrb[0].mxu0 %v540
      %v658 = vpop.f32.mrb[0].mxu0
      %v659 = vadd.f32 %v565, %v658
      %v660 = vpop.f32.mrb[0].mxu0
      %v661 = vpop.f32.mrb[0].mxu0
      %v662 = vpop.f32.mrb[0].mxu0
      %663 = vdwg.mxu0
      %v664 = vmax.f32 %v659, 0.0
      %v665 = vpack.c.bf16 %v664, %v664
      %666 = vst [vmem:[%s273] sm:$0xf] %v665
      %p667 = scmp.lt.s32.totalorder %s18, 3
      %s668 = scalar_select %p667, %s18, 3
      %s669 = smul.addr %s668, 4
      %s670 = scalar_lea.vmem %s7, %s669
      // Predicated region
      $region49: #{edge_encoder.1} parent=47 // pred_check
        %p671 = pneg %p188
      $region50: #{edge_encoder.1} parent=47 // pred_check_branch
        %673 = sbr.rel (%p671) target = $region52
      $region51: #{edge_encoder.1} parent=47 // pred_region
        _
      $region52: #{edge_encoder.1} parent=47 // pred_fallthru
        _
    $region48: #{edge_encoder.1} parent=5 // pred_fallthru
      _
    %p674 = scmp.le.s32.totalorder 2, %s13
    // Predicated region
    $region53: #{edge_encoder.1} parent=5 // pred_check
      %p675 = pneg %p674
    $region54: #{edge_encoder.1} parent=5 // pred_check_branch
      %677 = sbr.rel (%p675) target = $region56
    $region55: #{edge_encoder.1} parent=5 // pred_region
      %s678 = ssub.s32 %s13, 2
      // Predicated region
      $region57: #{edge_encoder.1} parent=55 // pred_check
        %p679 = pneg %p194
      $region58: #{edge_encoder.1} parent=55 // pred_check_branch
        %681 = sbr.rel (%p679) target = $region60
      $region59: #{edge_encoder.1} parent=55 // pred_region
        %p682 = scmp.lt.s32.totalorder %s19, 3
        %s683 = scalar_select %p682, %s19, 3
        %s684 = smul.addr %s683, 4
        %s685 = scalar_lea.vmem %s7, %s684
      $region60: #{edge_encoder.1} parent=55 // pred_fallthru
        _
    $region56: #{edge_encoder.1} parent=5 // pred_fallthru
      _
  $region6: #{edge_encoder.1} parent=0 // loop_footer
    %s17 = sadd.s32 1, %s13
  $region7: #{edge_encoder.1} parent=0 // loop_footer_branch
    %12 = sbr.rel target = $region3
  $region8: #{edge_encoder.1} parent=0 // loop_exit
    _

</llo_original>
